<compile_context>
chip_gen: v7x
topology: tpu7x:2x2x1
jax: 0.10.0
libtpu: 0.0.40
codegen_flags: <defaults>
</compile_context>

<pallas_src>
import functools

import jax
import jax.numpy as jnp
from jax import lax
from jax.experimental import pallas as pl
from jax.experimental.pallas import tpu as pltpu


def _round_up(a: int, b: int) -> int:
    return (a + b - 1) // b * b


# ---------------------------------------------------------------------------
# Median selection networks (trace-time Python; lowers to VPU min/max ops).
# ---------------------------------------------------------------------------

def _median_ce_plan(k: int):
    """Compare-exchange plan that places the median of k slots at slot k//2.

    Starts from the full bubble sorting network and dead-code-eliminates every
    min/max whose result never reaches slot k//2 (k=3 -> 4 ops).
    """
    m = k // 2
    ces = [(j, j + 1) for i in range(k) for j in range(k - 1 - i)]
    live = {m}
    plan = []
    for a, b in reversed(ces):
        need_min = a in live
        need_max = b in live
        if need_min or need_max:
            plan.append((a, b, need_min, need_max))
            live.add(a)
            live.add(b)
    plan.reverse()
    return plan


def _median_of_taps(taps):
    """Exact element-wise median of an odd number of equally-shaped arrays."""
    k = len(taps)
    if k == 1:
        return taps[0]
    if k == 5:
        # Minimal 10-op median-of-5 selection network.
        x0, x1, x2, x3, x4 = taps
        a = jnp.minimum(x0, x1)
        b = jnp.maximum(x0, x1)
        c = jnp.minimum(x3, x4)
        d = jnp.maximum(x3, x4)
        e = jnp.maximum(a, c)
        f = jnp.minimum(b, d)
        g = jnp.minimum(f, x2)
        h = jnp.maximum(f, x2)
        return jnp.maximum(g, jnp.minimum(h, e))
    # General odd k: pruned bubble network (correct for any odd k).
    # TODO(synk): plug in minimal selection networks for k >= 7 (13 CEs for 7).
    vals = list(taps)
    for a, b, need_min, need_max in _median_ce_plan(k):
        va, vb = vals[a], vals[b]
        if need_min:
            vals[a] = jnp.minimum(va, vb)
        if need_max:
            vals[b] = jnp.maximum(va, vb)
    return vals[k // 2]


# ---------------------------------------------------------------------------
# Kernel
# ---------------------------------------------------------------------------

def _median_filter_kernel(x_ref, o_ref, *, kernel_size, valid_len, mode):
    """x_ref / o_ref: (rb, L) blocks (lane axis = full signal length).

    Interior lanes use plain lane-rotated taps (pltpu.roll on the idle XLU
    slot, no masks).  Boundary handling is confined to one 128-lane-aligned
    strip per signal edge, recomputed with masks and stored over the interior
    result.  Ragged final row blocks are safe: each output row depends only on
    its own input row and out-of-range rows are discarded by Pallas.
    """
    k = kernel_size
    p = k // 2
    L = valid_len
    x = x_ref[...]                     # single block load
    rb, Lb = x.shape                   # Lb == L (lane axis never split/padded)
    out_dtype = o_ref.dtype

    if p == 0:                         # kernel_size == 1 -> identity
        o_ref[...] = x
        return

    # Lane-rotated taps: taps_plain[d + p][:, l] == x[:, (l + d) % Lb].
    use_roll = (Lb % 128 == 0) and (rb % 8 == 0)

    def _rot(d):
        s = d % Lb
        if s == 0:
            return x
        if use_roll:
            return pltpu.roll(x, shift=Lb - s, axis=1)     # XLU rotate (free-ish)
        return jnp.concatenate([x[:, s:], x[:, :s]], axis=1)

    taps_plain = [_rot(d) for d in range(-p, p + 1)]

    # Static strip plan: one 128-lane-aligned strip per boundary.
    WL = min(128, Lb)
    strips = [(0, WL)]
    if L > WL:
        hi0 = max(WL, ((L - p) // 128) * 128)    # covers lanes [L - p, L)
        strips.append((hi0, Lb - hi0))
    full_cover = (Lb <= 128) or (len(strips) == 2 and strips[1][0] <= strips[0][1])

    # Interior median: pure rolled taps — no iota, no masks, no broadcasts.
    if not full_cover:
        o_ref[...] = _median_of_taps(taps_plain).astype(out_dtype)

    # Boundary fix-up strips: masks / boundary columns only on (rb, <=~256) strips.
    for s0, W in strips:
        lane = s0 + lax.broadcasted_iota(jnp.int32, (rb, W), 1)
        need_left = s0 < p                    # some lane + d < 0 in this strip
        need_right = (s0 + W + p) > L         # some lane + d > L - 1 in this strip

        left_col = right_col = zero = None    # hoisted boundary columns
        if mode == 'replicate':
            if need_left:
                left_col = jnp.broadcast_to(x[:, 0:1], (rb, W))
            if need_right:
                right_col = jnp.broadcast_to(x[:, L - 1:L], (rb, W))
        elif mode == 'zeros' and (need_left or need_right):
            zero = jnp.zeros((rb, W), x.dtype)

        taps = []
        for d in range(-p, p + 1):
            t = taps_plain[d + p][:, s0:s0 + W]
            if d < 0 and need_left:
                # window coordinate lane + d < 0 for lanes < -d  -> left edge
                if mode == 'replicate':
                    t = jnp.where(lane < -d, left_col, t)
                elif mode == 'zeros':
                    t = jnp.where(lane < -d, zero, t)
                else:  # reflect: coordinate -m maps to x[:, m]
                    for l0 in range(-d):
                        if not (s0 <= l0 < s0 + W):
                            continue
                        src = jnp.broadcast_to(x[:, -d - l0:-d - l0 + 1], (rb, W))
                        t = jnp.where(lane == l0, src, t)
            elif d > 0 and need_right:
                # window coordinate lane + d > L - 1 for lanes > L - 1 - d
                if mode == 'replicate':
                    t = jnp.where(lane > L - 1 - d, right_col, t)
                elif mode == 'zeros':
                    t = jnp.where(lane > L - 1 - d, zero, t)
                else:  # reflect: coordinate L - 1 + m maps to x[:, L - 1 - m]
                    for m in range(1, d + 1):
                        l0 = L - 1 + m - d
                        if not (s0 <= l0 < s0 + W):
                            continue
                        src = jnp.broadcast_to(x[:, L - 1 - m:L - m], (rb, W))
                        t = jnp.where(lane == l0, src, t)
            taps.append(t)
        o_ref[:, s0:s0 + W] = _median_of_taps(taps).astype(out_dtype)


# ---------------------------------------------------------------------------
# Wrapper
# ---------------------------------------------------------------------------

def _vmem_config():
    """(input-tile target, working-set budget, vmem_limit) bytes, per generation."""
    # Conservative defaults are safe for v7x (64 MiB physical VMEM, 2 TCs).
    tile_target, ws_budget, vmem_limit = 1 << 20, 20 << 20, 32 << 20
    try:
        cap = getattr(pltpu.get_tpu_info(), "vmem_capacity_bytes", None)
    except Exception:
        cap = None
    if cap is not None and cap > (80 << 20):      # v5e / v6e: 128 MiB physical
        tile_target, ws_budget, vmem_limit = 2 << 20, 28 << 20, 48 << 20
    return tile_target, ws_budget, vmem_limit


def _choose_row_block(R, L, itemsize, kernel_size, tile_target, ws_budget):
    """Rows per block: ~1-2 MiB input tiles (already ~roofline), working set
    capped well inside scoped VMEM, and enough grid steps for real
    prefetch/writeback overlap on both v7x TensorCores."""
    if R <= 8:
        return R                                  # block spans the full row dim
    row_bytes = L * itemsize
    rb = max(8, (tile_target // row_bytes) // 8 * 8)
    # live full-block tiles ~ k taps + median temps + 2x double-buffered in/out
    live_tiles = kernel_size + 10
    rb = min(rb, max(8, (ws_budget // (live_tiles * row_bytes)) // 8 * 8))
    # >= 8 grid steps (>= 4 per v7x TC) when there is enough work, >= 2 otherwise
    steps = 8 if R >= 64 else (2 if R >= 16 else 1)
    rb = min(rb, max(8, (((R + steps - 1) // steps) // 8) * 8))
    return min(rb, _round_up(R, 8))


def median_filter_1d(x, kernel_size: int = 5, padding_mode: str = 'replicate'):
    """Pallas TPU median filter.  x: (B, C, L) -> (B, C, L)."""
    assert kernel_size % 2 == 1 and kernel_size > 0
    if padding_mode not in ('replicate', 'reflect', 'zeros'):
        raise NotImplementedError(padding_mode)
    B, C, L = x.shape
    p = kernel_size // 2
    if padding_mode == 'reflect':
        assert p < L, 'reflect padding requires kernel_size // 2 < L'

    R = B * C
    x2 = x.reshape(R, L)                          # metadata-only, no HBM pass
    itemsize = jnp.dtype(x.dtype).itemsize        # bf16 stays bf16 in-kernel
    tile_target, ws_budget, vmem_limit = _vmem_config()
    rb = _choose_row_block(R, L, itemsize, kernel_size, tile_target, ws_budget)
    grid = ((R + rb - 1) // rb,)                  # ragged final row block is OK

    out = pl.pallas_call(
        functools.partial(_median_filter_kernel, kernel_size=kernel_size,
                          valid_len=L, mode=padding_mode),
        out_shape=jax.ShapeDtypeStruct((R, L), x.dtype),
        grid_spec=pltpu.PrefetchScalarGridSpec(
            num_scalar_prefetch=0,
            grid=grid,
            # Lane axis = full L ("full dim" block): no wrapper pad, no slice,
            # zero extra HBM passes; rows may go ragged on the last block.
            in_specs=[pl.BlockSpec((rb, L), lambda i: (i, 0))],
            out_specs=pl.BlockSpec((rb, L), lambda i: (i, 0)),
        ),
        compiler_params=pltpu.CompilerParams(
            dimension_semantics=("parallel",),
            vmem_limit_bytes=vmem_limit,
        ),
    )(x2)

    # TODO(synk): L-tiled path with a p-lane halo (manual DMA / pl.Element index
    # maps) for extremely long signals where a full-L row block no longer fits,
    # and pipeline_mode=pl.Buffered(3) if v5e profiles show exposed DMA.
    return out.reshape(B, C, L)


# ---------------------------------------------------------------------------
# Pure-JAX reference mirroring the PyTorch forward (chunk_size=None).
# ---------------------------------------------------------------------------

def _median_filter_ref(x, kernel_size: int, padding_mode: str = 'replicate'):
    B, C, L = x.shape
    p = (kernel_size - 1) // 2
    mode = {'replicate': 'edge', 'reflect': 'reflect',
            'zeros': 'constant'}[padding_mode]
    xp = jnp.pad(x, ((0, 0), (0, 0), (p, p)), mode=mode)
    windows = jnp.stack([xp[:, :, j:j + L] for j in range(kernel_size)], axis=1)
    # torch.median over dim 1 with odd kernel_size == middle of sorted window.
    return jnp.sort(windows, axis=1)[:, kernel_size // 2, :, :]


if __name__ == "__main__":
    key = jax.random.PRNGKey(0)

    # Primary small config consistent with the module: (batch=2, channels=4, L=16).
    B, C, L = 2, 4, 16
    x = jax.random.normal(key, (B, C, L), dtype=jnp.float32)
    y = jax.block_until_ready(median_filter_1d(x, kernel_size=5,
                                               padding_mode='replicate'))
    assert y.shape == (B, C, L)
    assert jnp.allclose(y, _median_filter_ref(x, 5, 'replicate'), atol=1e-6)

    # Other padding modes + generic pruned network on the tiny shape.
    for ks, mode in ((3, 'zeros'), (3, 'reflect'), (7, 'replicate')):
        y2 = jax.block_until_ready(median_filter_1d(x, ks, mode))
        assert jnp.allclose(y2, _median_filter_ref(x, ks, mode), atol=1e-6), (ks, mode)

    # Lane-aligned path: pltpu.roll taps + interior / edge-strip split.
    xL = jax.random.normal(jax.random.PRNGKey(1), (2, 4, 384), dtype=jnp.float32)
    for ks, mode in ((5, 'replicate'), (3, 'reflect'), (7, 'zeros')):
        yL = jax.block_until_ready(median_filter_1d(xL, ks, mode))
        assert jnp.allclose(yL, _median_filter_ref(xL, ks, mode), atol=1e-6), (ks, mode)

    # Misaligned L and R < 8 (full-dim blocks, concat fallback, no wrapper pad).
    xM = jax.random.normal(jax.random.PRNGKey(2), (1, 3, 200), dtype=jnp.float32)
    yM = jax.block_until_ready(median_filter_1d(xM, 5, 'replicate'))
    assert jnp.allclose(yM, _median_filter_ref(xM, 5, 'replicate'), atol=1e-6)

    print("KERNEL_OK")
</pallas_src>

<mosaic_0001>
module attributes {stable_mosaic.version = 11 : i64} {
  func.func @_median_filter_kernel(%arg0: i32, %arg1: memref<8x16xf32, #tpu.memory_space<vmem>>, %arg2: memref<8x16xf32, #tpu.memory_space<vmem>>) attributes {dimension_semantics = [#tpu.dimension_semantics<parallel>], iteration_bounds = array<i64: 1>, scalar_prefetch = 0 : i64, scratch_operands = 0 : i64, tpu.core_type = #tpu.core_type<tc>, window_params = [{transform_indices = @transform_0, window_bounds = array<i64: 8, 16>}, {transform_indices = @transform_1, window_bounds = array<i64: 8, 16>}]} {
    %c0 = arith.constant 0 : index
    %c0_0 = arith.constant 0 : index
    %0 = vector.load %arg1[%c0, %c0_0] : memref<8x16xf32, #tpu.memory_space<vmem>>, vector<8x16xf32>
    %1 = vector.extract_strided_slice %0 {offsets = [0, 14], sizes = [8, 2], strides = [1, 1]} : vector<8x16xf32> to vector<8x2xf32>
    %2 = vector.extract_strided_slice %0 {offsets = [0, 0], sizes = [8, 14], strides = [1, 1]} : vector<8x16xf32> to vector<8x14xf32>
    %3 = tpu.concatenate %1, %2 in 1 : vector<8x2xf32>, vector<8x14xf32> -> vector<8x16xf32>
    %4 = vector.extract_strided_slice %0 {offsets = [0, 15], sizes = [8, 1], strides = [1, 1]} : vector<8x16xf32> to vector<8x1xf32>
    %5 = vector.extract_strided_slice %0 {offsets = [0, 0], sizes = [8, 15], strides = [1, 1]} : vector<8x16xf32> to vector<8x15xf32>
    %6 = tpu.concatenate %4, %5 in 1 : vector<8x1xf32>, vector<8x15xf32> -> vector<8x16xf32>
    %7 = vector.extract_strided_slice %0 {offsets = [0, 1], sizes = [8, 15], strides = [1, 1]} : vector<8x16xf32> to vector<8x15xf32>
    %8 = vector.extract_strided_slice %0 {offsets = [0, 0], sizes = [8, 1], strides = [1, 1]} : vector<8x16xf32> to vector<8x1xf32>
    %9 = tpu.concatenate %7, %8 in 1 : vector<8x15xf32>, vector<8x1xf32> -> vector<8x16xf32>
    %10 = vector.extract_strided_slice %0 {offsets = [0, 2], sizes = [8, 14], strides = [1, 1]} : vector<8x16xf32> to vector<8x14xf32>
    %11 = vector.extract_strided_slice %0 {offsets = [0, 0], sizes = [8, 2], strides = [1, 1]} : vector<8x16xf32> to vector<8x2xf32>
    %12 = tpu.concatenate %10, %11 in 1 : vector<8x14xf32>, vector<8x2xf32> -> vector<8x16xf32>
    %13 = tpu.iota {dimensions = array<i32: 1>} : vector<8x16xi32>
    %c0_i32 = arith.constant 0 : i32
    %14 = vector.broadcast %c0_i32 : i32 to vector<8x16xi32>
    %15 = arith.addi %14, %13 : vector<8x16xi32>
    %16 = vector.extract_strided_slice %0 {offsets = [0, 0], sizes = [8, 1], strides = [1, 1]} : vector<8x16xf32> to vector<8x1xf32>
    %17 = vector.shape_cast %16 : vector<8x1xf32> to vector<8x1xf32>
    %18 = vector.broadcast %17 : vector<8x1xf32> to vector<8x16xf32>
    %19 = vector.extract_strided_slice %0 {offsets = [0, 15], sizes = [8, 1], strides = [1, 1]} : vector<8x16xf32> to vector<8x1xf32>
    %20 = vector.shape_cast %19 : vector<8x1xf32> to vector<8x1xf32>
    %21 = vector.broadcast %20 : vector<8x1xf32> to vector<8x16xf32>
    %c2_i32 = arith.constant 2 : i32
    %22 = vector.broadcast %c2_i32 : i32 to vector<8x16xi32>
    %23 = arith.cmpi slt, %15, %22 : vector<8x16xi32>
    %24 = arith.select %23, %18, %3 : vector<8x16xi1>, vector<8x16xf32>
    %c1_i32 = arith.constant 1 : i32
    %25 = vector.broadcast %c1_i32 : i32 to vector<8x16xi32>
    %26 = arith.cmpi slt, %15, %25 : vector<8x16xi32>
    %27 = arith.select %26, %18, %6 : vector<8x16xi1>, vector<8x16xf32>
    %c14_i32 = arith.constant 14 : i32
    %28 = vector.broadcast %c14_i32 : i32 to vector<8x16xi32>
    %29 = arith.cmpi sgt, %15, %28 : vector<8x16xi32>
    %30 = arith.select %29, %21, %9 : vector<8x16xi1>, vector<8x16xf32>
    %c13_i32 = arith.constant 13 : i32
    %31 = vector.broadcast %c13_i32 : i32 to vector<8x16xi32>
    %32 = arith.cmpi sgt, %15, %31 : vector<8x16xi32>
    %33 = arith.select %32, %21, %12 : vector<8x16xi1>, vector<8x16xf32>
    %34 = arith.minimumf %24, %27 : vector<8x16xf32>
    %35 = arith.maximumf %24, %27 : vector<8x16xf32>
    %36 = arith.minimumf %30, %33 : vector<8x16xf32>
    %37 = arith.maximumf %30, %33 : vector<8x16xf32>
    %38 = arith.maximumf %34, %36 : vector<8x16xf32>
    %39 = arith.minimumf %35, %37 : vector<8x16xf32>
    %40 = arith.minimumf %39, %0 : vector<8x16xf32>
    %41 = arith.maximumf %39, %0 : vector<8x16xf32>
    %42 = arith.minimumf %41, %38 : vector<8x16xf32>
    %43 = arith.maximumf %40, %42 : vector<8x16xf32>
    %c0_1 = arith.constant 0 : index
    %c0_2 = arith.constant 0 : index
    %44 = vector.load %arg2[%c0_1, %c0_2] : memref<8x16xf32, #tpu.memory_space<vmem>>, vector<8x16xf32>
    tpu.vector_store %arg2[%c0_1, %c0_2], %43 {strides = array<i32>} : memref<8x16xf32, #tpu.memory_space<vmem>>, vector<8x16xf32>,
    return
  }
  func.func @transform_0(%arg0: i32) -> (i32, i32) {
    %c0_i32 = arith.constant 0 : i32
    %c0_i32_0 = arith.constant 0 : i32
    return %arg0, %c0_i32 : i32, i32
  }
  func.func @transform_1(%arg0: i32) -> (i32, i32) {
    %c0_i32 = arith.constant 0 : i32
    %c0_i32_0 = arith.constant 0 : i32
    return %arg0, %c0_i32 : i32, i32
  }
}

</mosaic_0001>

<llo_original>
// kernel: tpu_custom_call.1
$region0: #{tpu_custom_call.1}
  #allocation0 [shape = 'u32[]', space=smem, size = 0x4, offset = 0x4, fixed_abs, tag = 'smem constant byte address 0x4 - core index']
  #allocation1 [shape = 'u32[144,128]{1,0:T(1,128)}', space=vmem, size = 0x12000, scoped, tag = 'internal scratch']
  %s0 = inlined_call_operand.hbm [shape: f32[8,16], index: 0, kind: input, shape index: {}]
  %s1 = inlined_call_operand.hbm [shape: f32[8,16], index: 1, kind: output, shape index: {}]
  %s2 = sld [smem:[#allocation0]]
  $region18: #{tpu_custom_call.1} parent=0
    _
  %s4 = ssub.s32 1, %s2
  %s5 = scalar_select 0, %s4, %s2
  $region1: #{tpu_custom_call.1} parent=0
    #allocation2 [shape = 'u8[4096]{0}', space=vmem, size = 0x1000, scoped, tag = 'input window, operand 0, single buffered']
    #allocation3 [shape = 's32[1]{0}', space=sflag, size = 0x4, scoped, tag = 'scoped memory for tpu_custom_call.1']
    #allocation4 [shape = 's32[1]{0}', space=sflag, size = 0x4, scoped, tag = 'scoped memory for tpu_custom_call.1']
    #allocation5 [shape = 'u8[4096]{0}', space=vmem, size = 0x1000, scoped, tag = 'output window, operand 0, single buffered']
    %6 = vsyncpa [#allocation3], 0
    %7 = vsyncpa [#allocation4], 0
    // Predicated region
    $region2: #{tpu_custom_call.1} parent=1 // pred_check
      _
    $region3: #{tpu_custom_call.1} parent=1 // pred_check_branch
      %9 = sbr.rel (0) target = $region5
    $region4: #{tpu_custom_call.1} parent=1 // pred_region
      %s11 = ssub.s32 128, 128
      %12 = vsyncadd [#allocation3], %s11
      %s14 = sshll.u32 [#allocation2], 4
      %s15 = int_to_ptr.vmem [resolvable:$true] %s14
      %17 = dma.hbm_to_vmem [thread:$0]  %s0, 128, %s15, [#allocation3]
    $region5: #{tpu_custom_call.1} parent=1 // pred_fallthru
      _
    // Predicated region
    $region6: #{tpu_custom_call.1} parent=1 // pred_check
      _
    $region7: #{tpu_custom_call.1} parent=1 // pred_check_branch
      %19 = sbr.rel (0) target = $region9
    $region8: #{tpu_custom_call.1} parent=1 // pred_region
      %20 = dma.done [#allocation3], 128
    $region9: #{tpu_custom_call.1} parent=1 // pred_fallthru
      _
    %v21 = vld [vmem:[#allocation2] sm:$0xff]
    %23 = vrot.lane.b32.xlu0 %v21, 114
    %v24 = vpop.permute.xlu0 %23
    %26 = vrot.lane.b32.xlu0 %v21, 2
    %v27 = vpop.permute.xlu0 %26
    %vm29 = vcmask 15360
    %v30 = vsel %vm29, %v24, %v27
    %31 = vrot.lane.b32.xlu0 %v21, 113
    %v32 = vpop.permute.xlu0 %31
    %34 = vrot.lane.b32.xlu0 %v21, 1
    %v35 = vpop.permute.xlu0 %34
    %vm37 = vcmask 7168
    %v38 = vsel %vm37, %v32, %v35
    %39 = vrot.lane.b32.xlu0 %v21, 127
    %v40 = vpop.permute.xlu0 %39
    %42 = vrot.lane.b32.xlu0 %v21, 15
    %v43 = vpop.permute.xlu0 %42
    %vm45 = vcmask 121856
    %v46 = vsel %vm45, %v40, %v43
    %47 = vrot.lane.b32.xlu0 %v21, 126
    %v48 = vpop.permute.xlu0 %47
    %50 = vrot.lane.b32.xlu0 %v21, 14
    %v51 = vpop.permute.xlu0 %50
    %vm53 = vcmask 113664
    %v54 = vsel %vm53, %v48, %v51
    %v55 = vlaneseq
    %v56 = vand.u32 %v55, 127
    %57 = vset.pattern.permute.xlu0 0
    %58 = vperm.xlu0 %57, %v21
    %v59 = vpop.permute.xlu0 %58
    %61 = vset.pattern.permute.xlu0 15
    %62 = vperm.xlu0 %61, %v21
    %v63 = vpop.permute.xlu0 %62
    %vm65 = vcmp.lt.s32.totalorder %v56, 2
    %v66 = vsel %vm65, %v59, %v30
    %vm67 = vcmp.lt.s32.totalorder %v56, 1
    %v68 = vsel %vm67, %v59, %v38
    %vm69 = vcmp.gt.s32.totalorder %v56, 14
    %v70 = vsel %vm69, %v63, %v46
    %vm71 = vcmp.gt.s32.totalorder %v56, 13
    %v72 = vsel %vm71, %v63, %v54
    %v73 = vmin.f32 %v66, %v68
    %v74 = vmax.f32 %v66, %v68
    %v75 = vmin.f32 %v70, %v72
    %v76 = vmax.f32 %v70, %v72
    %v77 = vmax.f32 %v73, %v75
    %v78 = vmin.f32 %v74, %v76
    %v79 = vmin.f32 %v78, %v21
    %v80 = vmax.f32 %v78, %v21
    %v81 = vmin.f32 %v80, %v77
    %v82 = vmax.f32 %v79, %v81
    %vm83 = vcmask 130048
    %84 = vst.msk [vmem:[#allocation5] sm:$0xff] %vm83, %v82
    // Predicated region
    $region10: #{tpu_custom_call.1} parent=1 // pred_check
      _
    $region11: #{tpu_custom_call.1} parent=1 // pred_check_branch
      %86 = sbr.rel (0) target = $region13
    $region12: #{tpu_custom_call.1} parent=1 // pred_region
      %s88 = ssub.s32 128, 128
      %89 = vsyncadd [#allocation4], %s88
      %s91 = sshll.u32 [#allocation5], 4
      %s92 = int_to_ptr.vmem [resolvable:$true] %s91
      %94 = dma.vmem_to_hbm [thread:$0]  %s92, 128, %s1, [#allocation4]
    $region13: #{tpu_custom_call.1} parent=1 // pred_fallthru
      _
    // Predicated region
    $region14: #{tpu_custom_call.1} parent=1 // pred_check
      _
    $region15: #{tpu_custom_call.1} parent=1 // pred_check_branch
      %96 = sbr.rel (0) target = $region17
    $region16: #{tpu_custom_call.1} parent=1 // pred_region
      %97 = dma.done [#allocation4], 128
    $region17: #{tpu_custom_call.1} parent=1 // pred_fallthru
      _
    %98 = vsyncpa [#allocation3], 1
    %99 = vsyncpa [#allocation4], 1

</llo_original>
